<compile_context>
chip_gen: v6e
topology: v6e:2x2x1
jax: 0.10.0
libtpu: 0.0.40
codegen_flags: <defaults>
</compile_context>

<pallas_src>
import jax
import jax.numpy as jnp
from jax.experimental import pallas as pl
from jax.experimental.pallas import tpu as pltpu


def _mlp_kernel(x_ref, w1_ref, b1_ref, w2t_ref, b2_ref, o_ref):
    # fc1 on the MXU: bf16 x @ bf16 W1 with f32 accumulation.
    x_bf = x_ref[...].astype(jnp.bfloat16)
    h = jnp.dot(x_bf, w1_ref[...], preferred_element_type=jnp.float32)
    # bias + ReLU in f32 (v5e VPU has no bf16 ALU).
    h = jnp.maximum(h + b1_ref[...], 0.0)
    # dropout1: Dropout2d is identity in eval mode.
    # fc2 (N=1): degenerate on the MXU, so VPU multiply + single XLU lane
    # reduction over the padded hidden dim, then scalar bias from SMEM.
    o_ref[...] = jnp.sum(h * w2t_ref[...], axis=-1, keepdims=True) + b2_ref[0, 0]


def prepare_params(w1, b1, w2, b2):
    """One-time parameter prep, hoisted out of the per-call path.

    Pads the hidden dim to a multiple of 128 (lane-aligned; padded W2 rows are
    zero so the math is unchanged, since ReLU(0)*0 = 0) and casts the fc1
    weight to bf16 for the MXU.
    """
    H = w1.shape[1]
    h_pad = ((H + 127) // 128) * 128
    if h_pad != H:
        w1 = jnp.pad(w1, ((0, 0), (0, h_pad - H)))
        b1 = jnp.pad(b1, ((0, 0), (0, h_pad - H)))
        w2 = jnp.pad(w2, ((0, h_pad - H), (0, 0)))
    w1_bf = w1.astype(jnp.bfloat16)              # MXU operand (halves W1 DMA)
    b1_f32 = b1.astype(jnp.float32)              # f32 epilogue (v5e-friendly)
    w2t_f32 = w2.T.astype(jnp.float32)           # (1, h_pad), lane-major
    b2_f32 = b2.astype(jnp.float32).reshape(1, 1)
    return w1_bf, b1_f32, w2t_f32, b2_f32


def mlp_net(x, w1_bf, b1, w2t, b2):
    """x: (B, F) f32; prepared params from prepare_params -> (B, 1) f32."""
    B, F = x.shape
    h_pad = w1_bf.shape[1]

    cost = pl.CostEstimate(
        flops=2 * B * F * h_pad + 4 * B * h_pad,   # matmul + bias/relu/mul/reduce
        transcendentals=0,
        bytes_accessed=(x.size * 4 + w1_bf.size * 2 + b1.size * 4
                        + w2t.size * 4 + b2.size * 4 + B * 4),
    )

    return pl.pallas_call(
        _mlp_kernel,
        out_shape=jax.ShapeDtypeStruct((B, 1), jnp.float32),
        in_specs=[
            pl.BlockSpec(memory_space=pltpu.MemorySpace.VMEM),   # x   (whole)
            pl.BlockSpec(memory_space=pltpu.MemorySpace.VMEM),   # W1  (whole)
            pl.BlockSpec(memory_space=pltpu.MemorySpace.VMEM),   # b1
            pl.BlockSpec(memory_space=pltpu.MemorySpace.VMEM),   # w2^T
            pl.BlockSpec(memory_space=pltpu.MemorySpace.SMEM),   # b2 scalar
        ],
        out_specs=pl.BlockSpec(memory_space=pltpu.MemorySpace.VMEM),
        cost_estimate=cost,
    )(x, w1_bf, b1, w2t, b2)


def init_params(key, input_size, hidden=2000):
    # PyTorch nn.Linear default init: U(-1/sqrt(fan_in), 1/sqrt(fan_in))
    k1, k2, k3, k4 = jax.random.split(key, 4)
    lim1 = 1.0 / jnp.sqrt(input_size)
    lim2 = 1.0 / jnp.sqrt(hidden)
    w1 = jax.random.uniform(k1, (input_size, hidden), jnp.float32, -lim1, lim1)
    b1 = jax.random.uniform(k2, (1, hidden), jnp.float32, -lim1, lim1)
    w2 = jax.random.uniform(k3, (hidden, 1), jnp.float32, -lim2, lim2)
    b2 = jax.random.uniform(k4, (1, 1), jnp.float32, -lim2, lim2)
    return w1, b1, w2, b2


if __name__ == "__main__":
    key = jax.random.PRNGKey(0)
    kx, kp = jax.random.split(key)

    batch, input_size, hidden = 8, 64, 2000
    x = jax.random.normal(kx, (batch, input_size), jnp.float32)
    w1, b1, w2, b2 = init_params(kp, input_size, hidden)

    # One-time parameter prep (pad + cast), then the per-call kernel.
    w1_p, b1_p, w2t_p, b2_p = prepare_params(w1, b1, w2, b2)

    out = jax.block_until_ready(mlp_net(x, w1_p, b1_p, w2t_p, b2_p))
    assert out.shape == (batch, 1)

    # Reference matched to kernel numerics (bf16 fc1 on MXU w/ f32 accumulation,
    # f32 VPU/XLU epilogue). Dropout is identity in eval mode.
    h_ref = jnp.maximum(
        jnp.dot(x.astype(jnp.bfloat16), w1_p,
                preferred_element_type=jnp.float32) + b1_p, 0.0)
    ref_bf = jnp.sum(h_ref * w2t_p, axis=-1, keepdims=True) + b2_p
    assert jnp.allclose(out, ref_bf, atol=5e-4, rtol=1e-3), (
        jnp.max(jnp.abs(out - ref_bf)))

    # Sanity check against the full-f32 reference (loose: bf16 fc1 rounding).
    ref_f32 = jnp.maximum(x @ w1 + b1, 0.0) @ w2 + b2
    assert jnp.allclose(out, ref_f32, atol=5e-2, rtol=5e-2), (
        jnp.max(jnp.abs(out - ref_f32)))

    print("KERNEL_OK")
</pallas_src>

<mosaic_0001>
module attributes {stable_mosaic.version = 11 : i64} {
  func.func @_mlp_kernel(%arg0: memref<8x64xf32, #tpu.memory_space<vmem>>, %arg1: memref<64x2048xbf16, #tpu.memory_space<vmem>>, %arg2: memref<1x2048xf32, #tpu.memory_space<vmem>>, %arg3: memref<1x2048xf32, #tpu.memory_space<vmem>>, %arg4: memref<1x1xf32, #tpu.memory_space<smem>>, %arg5: memref<8x1xf32, #tpu.memory_space<vmem>>) attributes {dimension_semantics = [], scalar_prefetch = 0 : i64, scratch_operands = 0 : i64, tpu.core_type = #tpu.core_type<tc>} {
    %c0 = arith.constant 0 : index
    %c0_0 = arith.constant 0 : index
    %0 = vector.load %arg0[%c0, %c0_0] : memref<8x64xf32, #tpu.memory_space<vmem>>, vector<8x64xf32>
    %1 = arith.truncf %0 : vector<8x64xf32> to vector<8x64xbf16>
    %c0_1 = arith.constant 0 : index
    %c0_2 = arith.constant 0 : index
    %2 = vector.load %arg1[%c0_1, %c0_2] : memref<64x2048xbf16, #tpu.memory_space<vmem>>, vector<64x2048xbf16>
    %cst = arith.constant dense<0.000000e+00> : vector<8x2048xf32>
    %3 = tpu.matmul %1, %2, %cst {dimension_numbers = #tpu.dot_dimension_numbers<[1], [0], [0], [1], [0, 0, 1, 1], [], []>} : vector<8x64xbf16>, vector<64x2048xbf16>, vector<8x2048xf32> -> vector<8x2048xf32>
    %c0_3 = arith.constant 0 : index
    %c0_4 = arith.constant 0 : index
    %4 = vector.load %arg2[%c0_3, %c0_4] : memref<1x2048xf32, #tpu.memory_space<vmem>>, vector<1x2048xf32>
    %5 = vector.broadcast %4 : vector<1x2048xf32> to vector<8x2048xf32>
    %6 = arith.addf %3, %5 : vector<8x2048xf32>
    %cst_5 = arith.constant 0.000000e+00 : f32
    %7 = vector.broadcast %cst_5 : f32 to vector<8x2048xf32>
    %8 = arith.maximumf %6, %7 : vector<8x2048xf32>
    %c0_6 = arith.constant 0 : index
    %c0_7 = arith.constant 0 : index
    %9 = vector.load %arg3[%c0_6, %c0_7] : memref<1x2048xf32, #tpu.memory_space<vmem>>, vector<1x2048xf32>
    %10 = vector.broadcast %9 : vector<1x2048xf32> to vector<8x2048xf32>
    %11 = arith.mulf %8, %10 : vector<8x2048xf32>
    %cst_8 = arith.constant dense<0.000000e+00> : vector<8xf32>
    %12 = vector.multi_reduction <add>, %11, %cst_8 [1] : vector<8x2048xf32> to vector<8xf32>
    %13 = vector.shape_cast %12 : vector<8xf32> to vector<8x1xf32>
    %c0_9 = arith.constant 0 : index
    %c0_10 = arith.constant 0 : index
    %14 = memref.load %arg4[%c0_9, %c0_10] : memref<1x1xf32, #tpu.memory_space<smem>>
    %15 = vector.broadcast %14 : f32 to vector<8x1xf32>
    %16 = arith.addf %13, %15 : vector<8x1xf32>
    %c0_11 = arith.constant 0 : index
    %c0_12 = arith.constant 0 : index
    %17 = vector.load %arg5[%c0_11, %c0_12] : memref<8x1xf32, #tpu.memory_space<vmem>>, vector<8x1xf32>
    tpu.vector_store %arg5[%c0_11, %c0_12], %16 {strides = array<i32>} : memref<8x1xf32, #tpu.memory_space<vmem>>, vector<8x1xf32>,
    return
  }
}

</mosaic_0001>

<llo_original>
// kernel: tpu_custom_call.1
$region0: #{tpu_custom_call.1}
  #allocation0 [shape = 'u32[]', space=smem, size = 0x4, offset = 0x4, fixed_abs, tag = 'smem constant byte address 0x4 - core index']
  #allocation1 [shape = 'u32[144,128]{1,0:T(1,128)}', space=vmem, size = 0x12000, scoped, tag = 'internal scratch']
  #allocation2 [shape = 'f32[1,1]{1,0:T(1,128)S(6)}', space=smem, size = 0x200, scoped, tag = 'scoped memory for tpu_custom_call.1']
  %s0 = inlined_call_operand.hbm [shape: f32[8,64], index: 0, kind: input, shape index: {}]
  %s1 = inlined_call_operand.hbm [shape: bf16[64,2048], index: 1, kind: input, shape index: {}]
  %s2 = inlined_call_operand.hbm [shape: f32[1,2048], index: 2, kind: input, shape index: {}]
  %s3 = inlined_call_operand.hbm [shape: f32[1,2048], index: 3, kind: input, shape index: {}]
  %s4 = inlined_call_operand.<no memory space> [shape: f32[1,1], index: 4, kind: input, shape index: {}]
  %s5 = inlined_call_operand.vmem [shape: f32[8,1], index: 5, kind: output, shape index: {}]
  %s6 = sld [smem:[#allocation0]]
  $region46: #{tpu_custom_call.1} parent=0
    _
  %s8 = ssub.s32 1, %s6
  %s9 = scalar_select 0, %s8, %s6
  %10 = sst [smem:[#allocation2]] %s4
  $region1: #{tpu_custom_call.1} parent=0
    #allocation3 [shape = 'u8[4096]{0}', space=vmem, size = 0x1000, scoped, tag = 'input window, operand 0, single buffered']
    #allocation4 [shape = 's32[1]{0}', space=sflag, size = 0x4, scoped, tag = 'scoped memory for tpu_custom_call.1']
    #allocation5 [shape = 'u8[262144]{0}', space=vmem, size = 0x40000, scoped, tag = 'input window, operand 1, single buffered']
    #allocation6 [shape = 's32[1]{0}', space=sflag, size = 0x4, scoped, tag = 'scoped memory for tpu_custom_call.1']
    #allocation7 [shape = 'u8[8192]{0}', space=vmem, size = 0x2000, scoped, tag = 'input window, operand 2, single buffered']
    #allocation8 [shape = 'u8[8192]{0}', space=vmem, size = 0x2000, scoped, tag = 'input window, operand 3, single buffered']
    #allocation9 [shape = 's32[1]{0}', space=sflag, size = 0x4, scoped, tag = 'scoped memory for tpu_custom_call.1']
    %11 = vsyncpa [#allocation4], 0
    %12 = vsyncpa [#allocation6], 0
    %13 = vsyncpa [#allocation9], 0
    // Predicated region
    $region2: #{tpu_custom_call.1} parent=1 // pred_check
      _
    $region3: #{tpu_custom_call.1} parent=1 // pred_check_branch
      %15 = sbr.rel (0) target = $region5
    $region4: #{tpu_custom_call.1} parent=1 // pred_region
      %s17 = ssub.s32 128, 128
      %18 = vsyncadd [#allocation4], %s17
      %s20 = sshll.u32 [#allocation3], 4
      %s21 = int_to_ptr.vmem [resolvable:$true] %s20
      %23 = dma.hbm_to_vmem [thread:$0]  %s0, 128, %s21, [#allocation4]
    $region5: #{tpu_custom_call.1} parent=1 // pred_fallthru
      _
    // Predicated region
    $region6: #{tpu_custom_call.1} parent=1 // pred_check
      _
    $region7: #{tpu_custom_call.1} parent=1 // pred_check_branch
      %25 = sbr.rel (0) target = $region9
    $region8: #{tpu_custom_call.1} parent=1 // pred_region
      %s27 = ssub.s32 8192, 8192
      %28 = vsyncadd [#allocation6], %s27
      %s29 = sshll.u32 [#allocation5], 4
      %s30 = int_to_ptr.vmem [resolvable:$true] %s29
      %35 = dma.hbm_to_vmem [thread:$0]  %s1, 8192, %s30, [#allocation6], 1024, 1024, 64
    $region9: #{tpu_custom_call.1} parent=1 // pred_fallthru
      _
    // Predicated region
    $region10: #{tpu_custom_call.1} parent=1 // pred_check
      _
    $region11: #{tpu_custom_call.1} parent=1 // pred_check_branch
      %37 = sbr.rel (0) target = $region13
    $region12: #{tpu_custom_call.1} parent=1 // pred_region
      %s39 = ssub.s32 256, 256
      %40 = vsyncadd [#allocation6], %s39
      %s42 = sshll.u32 [#allocation7], 4
      %s43 = int_to_ptr.vmem [resolvable:$true] %s42
      %45 = dma.hbm_to_vmem [thread:$0]  %s2, 256, %s43, [#allocation6]
    $region13: #{tpu_custom_call.1} parent=1 // pred_fallthru
      _
    // Predicated region
    $region14: #{tpu_custom_call.1} parent=1 // pred_check
      _
    $region15: #{tpu_custom_call.1} parent=1 // pred_check_branch
      %47 = sbr.rel (0) target = $region17
    $region16: #{tpu_custom_call.1} parent=1 // pred_region
      %s49 = ssub.s32 256, 256
      %50 = vsyncadd [#allocation9], %s49
      %s52 = sshll.u32 [#allocation8], 4
      %s53 = int_to_ptr.vmem [resolvable:$true] %s52
      %55 = dma.hbm_to_vmem [thread:$0]  %s3, 256, %s53, [#allocation9]
    $region17: #{tpu_custom_call.1} parent=1 // pred_fallthru
      _
    // Predicated region
    $region18: #{tpu_custom_call.1} parent=1 // pred_check
      _
    $region19: #{tpu_custom_call.1} parent=1 // pred_check_branch
      %57 = sbr.rel (0) target = $region21
    $region20: #{tpu_custom_call.1} parent=1 // pred_region
      _
    $region21: #{tpu_custom_call.1} parent=1 // pred_fallthru
      _
    // Predicated region
    $region22: #{tpu_custom_call.1} parent=1 // pred_check
      _
    $region23: #{tpu_custom_call.1} parent=1 // pred_check_branch
      %59 = sbr.rel (0) target = $region25
    $region24: #{tpu_custom_call.1} parent=1 // pred_region
      %60 = dma.done [#allocation4], 128
    $region25: #{tpu_custom_call.1} parent=1 // pred_fallthru
      _
    // Predicated region
    $region26: #{tpu_custom_call.1} parent=1 // pred_check
      _
    $region27: #{tpu_custom_call.1} parent=1 // pred_check_branch
      %62 = sbr.rel (0) target = $region29
    $region28: #{tpu_custom_call.1} parent=1 // pred_region
      %63 = dma.done [#allocation6], 8192
    $region29: #{tpu_custom_call.1} parent=1 // pred_fallthru
      _
    // Predicated region
    $region30: #{tpu_custom_call.1} parent=1 // pred_check
      _
    $region31: #{tpu_custom_call.1} parent=1 // pred_check_branch
      %65 = sbr.rel (0) target = $region33
    $region32: #{tpu_custom_call.1} parent=1 // pred_region
      %66 = dma.done [#allocation6], 256
    $region33: #{tpu_custom_call.1} parent=1 // pred_fallthru
      _
    // Predicated region
    $region34: #{tpu_custom_call.1} parent=1 // pred_check
      _
    $region35: #{tpu_custom_call.1} parent=1 // pred_check_branch
      %68 = sbr.rel (0) target = $region37
    $region36: #{tpu_custom_call.1} parent=1 // pred_region
      %69 = dma.done [#allocation9], 256
    $region37: #{tpu_custom_call.1} parent=1 // pred_fallthru
      _
    %v71 = vld [vmem:[#allocation3] sm:$0xff]
    %v72 = vpack.c.bf16 %v71, %v71
    %v73 = vld [vmem:[#allocation5] sm:$0xff]
    %v74 = vld [vmem:[#allocation5 + $0x8] sm:$0xff]
    %v75 = vld [vmem:[#allocation5 + $0x10] sm:$0xff]
    %v76 = vld [vmem:[#allocation5 + $0x18] sm:$0xff]
    %v77 = vld [vmem:[#allocation5 + $0x20] sm:$0xff]
    %v78 = vld [vmem:[#allocation5 + $0x28] sm:$0xff]
    %v79 = vld [vmem:[#allocation5 + $0x30] sm:$0xff]
    %v80 = vld [vmem:[#allocation5 + $0x38] sm:$0xff]
    %v81 = vld [vmem:[#allocation5 + $0x40] sm:$0xff]
    %v82 = vld [vmem:[#allocation5 + $0x48] sm:$0xff]
    %v83 = vld [vmem:[#allocation5 + $0x50] sm:$0xff]
    %v84 = vld [vmem:[#allocation5 + $0x58] sm:$0xff]
    %v85 = vld [vmem:[#allocation5 + $0x60] sm:$0xff]
    %v86 = vld [vmem:[#allocation5 + $0x68] sm:$0xff]
    %v87 = vld [vmem:[#allocation5 + $0x70] sm:$0xff]
    %v88 = vld [vmem:[#allocation5 + $0x78] sm:$0xff]
    %v89 = vld [vmem:[#allocation5 + $0x80] sm:$0xff]
    %v90 = vld [vmem:[#allocation5 + $0x88] sm:$0xff]
    %v91 = vld [vmem:[#allocation5 + $0x90] sm:$0xff]
    %v92 = vld [vmem:[#allocation5 + $0x98] sm:$0xff]
    %v93 = vld [vmem:[#allocation5 + $0xa0] sm:$0xff]
    %v94 = vld [vmem:[#allocation5 + $0xa8] sm:$0xff]
    %v95 = vld [vmem:[#allocation5 + $0xb0] sm:$0xff]
    %v96 = vld [vmem:[#allocation5 + $0xb8] sm:$0xff]
    %v97 = vld [vmem:[#allocation5 + $0xc0] sm:$0xff]
    %v98 = vld [vmem:[#allocation5 + $0xc8] sm:$0xff]
    %v99 = vld [vmem:[#allocation5 + $0xd0] sm:$0xff]
    %v100 = vld [vmem:[#allocation5 + $0xd8] sm:$0xff]
    %v101 = vld [vmem:[#allocation5 + $0xe0] sm:$0xff]
    %v102 = vld [vmem:[#allocation5 + $0xe8] sm:$0xff]
    %v103 = vld [vmem:[#allocation5 + $0xf0] sm:$0xff]
    %v104 = vld [vmem:[#allocation5 + $0xf8] sm:$0xff]
    %v105 = vld [vmem:[#allocation5 + $0x100] sm:$0xff]
    %v106 = vld [vmem:[#allocation5 + $0x108] sm:$0xff]
    %v107 = vld [vmem:[#allocation5 + $0x110] sm:$0xff]
    %v108 = vld [vmem:[#allocation5 + $0x118] sm:$0xff]
    %v109 = vld [vmem:[#allocation5 + $0x120] sm:$0xff]
    %v110 = vld [vmem:[#allocation5 + $0x128] sm:$0xff]
    %v111 = vld [vmem:[#allocation5 + $0x130] sm:$0xff]
    %v112 = vld [vmem:[#allocation5 + $0x138] sm:$0xff]
    %v113 = vld [vmem:[#allocation5 + $0x140] sm:$0xff]
    %v114 = vld [vmem:[#allocation5 + $0x148] sm:$0xff]
    %v115 = vld [vmem:[#allocation5 + $0x150] sm:$0xff]
    %v116 = vld [vmem:[#allocation5 + $0x158] sm:$0xff]
    %v117 = vld [vmem:[#allocation5 + $0x160] sm:$0xff]
    %v118 = vld [vmem:[#allocation5 + $0x168] sm:$0xff]
    %v119 = vld [vmem:[#allocation5 + $0x170] sm:$0xff]
    %v120 = vld [vmem:[#allocation5 + $0x178] sm:$0xff]
    %v121 = vld [vmem:[#allocation5 + $0x180] sm:$0xff]
    %v122 = vld [vmem:[#allocation5 + $0x188] sm:$0xff]
    %v123 = vld [vmem:[#allocation5 + $0x190] sm:$0xff]
    %v124 = vld [vmem:[#allocation5 + $0x198] sm:$0xff]
    %v125 = vld [vmem:[#allocation5 + $0x1a0] sm:$0xff]
    %v126 = vld [vmem:[#allocation5 + $0x1a8] sm:$0xff]
    %v127 = vld [vmem:[#allocation5 + $0x1b0] sm:$0xff]
    %v128 = vld [vmem:[#allocation5 + $0x1b8] sm:$0xff]
    %v129 = vld [vmem:[#allocation5 + $0x1c0] sm:$0xff]
    %v130 = vld [vmem:[#allocation5 + $0x1c8] sm:$0xff]
    %v131 = vld [vmem:[#allocation5 + $0x1d0] sm:$0xff]
    %v132 = vld [vmem:[#allocation5 + $0x1d8] sm:$0xff]
    %v133 = vld [vmem:[#allocation5 + $0x1e0] sm:$0xff]
    %v134 = vld [vmem:[#allocation5 + $0x1e8] sm:$0xff]
    %v135 = vld [vmem:[#allocation5 + $0x1f0] sm:$0xff]
    %v136 = vld [vmem:[#allocation5 + $0x1f8] sm:$0xff]
    %v137 = vld [vmem:[#allocation7] sm:$0xff]
    %v138 = vld [vmem:[#allocation7 + $0x8] sm:$0xff]
    %v141 = vlaneseq
    %v142 = vshrl.u32 %v141, 7
    %v143 = vsub.s32 0, %v142
    %v144 = vrot.slane %v137, %v143
    %v145 = vlaneseq
    %v146 = vshrl.u32 %v145, 7
    %v147 = vsub.s32 1, %v146
    %v148 = vrot.slane %v137, %v147
    %v149 = vlaneseq
    %v150 = vshrl.u32 %v149, 7
    %v151 = vsub.s32 2, %v150
    %v152 = vrot.slane %v137, %v151
    %v153 = vlaneseq
    %v154 = vshrl.u32 %v153, 7
    %v155 = vsub.s32 3, %v154
    %v156 = vrot.slane %v137, %v155
    %v157 = vlaneseq
    %v158 = vshrl.u32 %v157, 7
    %v159 = vsub.s32 4, %v158
    %v160 = vrot.slane %v137, %v159
    %v161 = vlaneseq
    %v162 = vshrl.u32 %v161, 7
    %v163 = vsub.s32 5, %v162
    %v164 = vrot.slane %v137, %v163
    %v165 = vlaneseq
    %v166 = vshrl.u32 %v165, 7
    %v167 = vsub.s32 6, %v166
    %v168 = vrot.slane %v137, %v167
    %v169 = vlaneseq
    %v170 = vshrl.u32 %v169, 7
    %v171 = vsub.s32 7, %v170
    %v172 = vrot.slane %v137, %v171
    %v173 = vlaneseq
    %v174 = vshrl.u32 %v173, 7
    %v175 = vsub.s32 0, %v174
    %v176 = vrot.slane %v138, %v175
    %v177 = vlaneseq
    %v178 = vshrl.u32 %v177, 7
    %v179 = vsub.s32 1, %v178
    %v180 = vrot.slane %v138, %v179
    %v181 = vlaneseq
    %v182 = vshrl.u32 %v181, 7
    %v183 = vsub.s32 2, %v182
    %v184 = vrot.slane %v138, %v183
    %v185 = vlaneseq
    %v186 = vshrl.u32 %v185, 7
    %v187 = vsub.s32 3, %v186
    %v188 = vrot.slane %v138, %v187
    %v189 = vlaneseq
    %v190 = vshrl.u32 %v189, 7
    %v191 = vsub.s32 4, %v190
    %v192 = vrot.slane %v138, %v191
    %v193 = vlaneseq
    %v194 = vshrl.u32 %v193, 7
    %v195 = vsub.s32 5, %v194
    %v196 = vrot.slane %v138, %v195
    %v197 = vlaneseq
    %v198 = vshrl.u32 %v197, 7
    %v199 = vsub.s32 6, %v198
    %v200 = vrot.slane %v138, %v199
    %v201 = vlaneseq
    %v202 = vshrl.u32 %v201, 7
    %v203 = vsub.s32 7, %v202
    %v204 = vrot.slane %v138, %v203
    %v285 = vunpack.c.l.b16 %v73
    %v286 = vunpack.c.h.b16 %v73
    %v287 = vunpack.c.l.b16 %v74
    %v288 = vunpack.c.h.b16 %v74
    %v289 = vunpack.c.l.b16 %v75
    %v290 = vunpack.c.h.b16 %v75
    %v291 = vunpack.c.l.b16 %v76
    %v292 = vunpack.c.h.b16 %v76
    %v293 = vunpack.c.l.b16 %v77
    %v294 = vunpack.c.h.b16 %v77
    %v295 = vunpack.c.l.b16 %v78
    %v296 = vunpack.c.h.b16 %v78
    %v297 = vunpack.c.l.b16 %v79
    %v298 = vunpack.c.h.b16 %v79
    %v299 = vunpack.c.l.b16 %v80
    %v300 = vunpack.c.h.b16 %v80
    %v301 = vunpack.c.l.b16 %v81
    %v302 = vunpack.c.h.b16 %v81
    %v303 = vunpack.c.l.b16 %v82
    %v304 = vunpack.c.h.b16 %v82
    %v305 = vunpack.c.l.b16 %v83
    %v306 = vunpack.c.h.b16 %v83
    %v307 = vunpack.c.l.b16 %v84
    %v308 = vunpack.c.h.b16 %v84
    %v309 = vunpack.c.l.b16 %v85
    %v310 = vunpack.c.h.b16 %v85
    %v311 = vunpack.c.l.b16 %v86
    %v312 = vunpack.c.h.b16 %v86
    %v313 = vunpack.c.l.b16 %v87
    %v314 = vunpack.c.h.b16 %v87
    %v315 = vunpack.c.l.b16 %v88
    %v316 = vunpack.c.h.b16 %v88
    %v317 = vunpack.c.l.b16 %v89
    %v318 = vunpack.c.h.b16 %v89
    %v319 = vunpack.c.l.b16 %v90
    %v320 = vunpack.c.h.b16 %v90
    %v321 = vunpack.c.l.b16 %v91
    %v322 = vunpack.c.h.b16 %v91
    %v323 = vunpack.c.l.b16 %v92
    %v324 = vunpack.c.h.b16 %v92
    %v325 = vunpack.c.l.b16 %v93
    %v326 = vunpack.c.h.b16 %v93
    %v327 = vunpack.c.l.b16 %v94
    %v328 = vunpack.c.h.b16 %v94
    %v329 = vunpack.c.l.b16 %v95
    %v330 = vunpack.c.h.b16 %v95
    %v331 = vunpack.c.l.b16 %v96
    %v332 = vunpack.c.h.b16 %v96
    %v333 = vunpack.c.l.b16 %v97
    %v334 = vunpack.c.h.b16 %v97
    %v335 = vunpack.c.l.b16 %v98
    %v336 = vunpack.c.h.b16 %v98
    %v337 = vunpack.c.l.b16 %v99
    %v338 = vunpack.c.h.b16 %v99
    %v339 = vunpack.c.l.b16 %v100
    %v340 = vunpack.c.h.b16 %v100
    %v341 = vunpack.c.l.b16 %v101
    %v342 = vunpack.c.h.b16 %v101
    %v343 = vunpack.c.l.b16 %v102
    %v344 = vunpack.c.h.b16 %v102
    %v345 = vunpack.c.l.b16 %v103
    %v346 = vunpack.c.h.b16 %v103
    %v347 = vunpack.c.l.b16 %v104
    %v348 = vunpack.c.h.b16 %v104
    %v349 = vunpack.c.l.b16 %v105
    %v350 = vunpack.c.h.b16 %v105
    %v351 = vunpack.c.l.b16 %v106
    %v352 = vunpack.c.h.b16 %v106
    %v353 = vunpack.c.l.b16 %v107
    %v354 = vunpack.c.h.b16 %v107
    %v355 = vunpack.c.l.b16 %v108
    %v356 = vunpack.c.h.b16 %v108
    %v357 = vunpack.c.l.b16 %v109
    %v358 = vunpack.c.h.b16 %v109
    %v359 = vunpack.c.l.b16 %v110
    %v360 = vunpack.c.h.b16 %v110
    %v361 = vunpack.c.l.b16 %v111
    %v362 = vunpack.c.h.b16 %v111
    %v363 = vunpack.c.l.b16 %v112
    %v364 = vunpack.c.h.b16 %v112
    %v365 = vunpack.c.l.b16 %v113
    %v366 = vunpack.c.h.b16 %v113
    %v367 = vunpack.c.l.b16 %v114
    %v368 = vunpack.c.h.b16 %v114
    %v369 = vunpack.c.l.b16 %v115
    %v370 = vunpack.c.h.b16 %v115
    %v371 = vunpack.c.l.b16 %v116
    %v372 = vunpack.c.h.b16 %v116
    %v373 = vunpack.c.l.b16 %v117
    %v374 = vunpack.c.h.b16 %v117
    %v375 = vunpack.c.l.b16 %v118
    %v376 = vunpack.c.h.b16 %v118
    %v377 = vunpack.c.l.b16 %v119
    %v378 = vunpack.c.h.b16 %v119
    %v379 = vunpack.c.l.b16 %v120
    %v380 = vunpack.c.h.b16 %v120
    %v381 = vunpack.c.l.b16 %v121
    %v382 = vunpack.c.h.b16 %v121
    %v383 = vunpack.c.l.b16 %v122
    %v384 = vunpack.c.h.b16 %v122
    %v385 = vunpack.c.l.b16 %v123
    %v386 = vunpack.c.h.b16 %v123
    %v387 = vunpack.c.l.b16 %v124
    %v388 = vunpack.c.h.b16 %v124
    %v389 = vunpack.c.l.b16 %v125
    %v390 = vunpack.c.h.b16 %v125
    %v391 = vunpack.c.l.b16 %v126
    %v392 = vunpack.c.h.b16 %v126
    %v393 = vunpack.c.l.b16 %v127
    %v394 = vunpack.c.h.b16 %v127
    %v395 = vunpack.c.l.b16 %v128
    %v396 = vunpack.c.h.b16 %v128
    %v397 = vunpack.c.l.b16 %v129
    %v398 = vunpack.c.h.b16 %v129
    %v399 = vunpack.c.l.b16 %v130
    %v400 = vunpack.c.h.b16 %v130
    %v401 = vunpack.c.l.b16 %v131
    %v402 = vunpack.c.h.b16 %v131
    %v403 = vunpack.c.l.b16 %v132
    %v404 = vunpack.c.h.b16 %v132
    %v405 = vunpack.c.l.b16 %v133
    %v406 = vunpack.c.h.b16 %v133
    %v407 = vunpack.c.l.b16 %v134
    %v408 = vunpack.c.h.b16 %v134
    %v409 = vunpack.c.l.b16 %v135
    %v410 = vunpack.c.h.b16 %v135
    %v411 = vunpack.c.l.b16 %v136
    %v412 = vunpack.c.h.b16 %v136
    %v413 = vpack.c.b16 %v301, %v285
    %v414 = vpack.c.b16 %v302, %v286
    %v415 = vpack.c.b16 %v303, %v287
    %v416 = vpack.c.b16 %v304, %v288
    %v417 = vpack.c.b16 %v305, %v289
    %v418 = vpack.c.b16 %v306, %v290
    %v419 = vpack.c.b16 %v307, %v291
    %v420 = vpack.c.b16 %v308, %v292
    %v421 = vpack.c.b16 %v309, %v293
    %v422 = vpack.c.b16 %v310, %v294
    %v423 = vpack.c.b16 %v311, %v295
    %v424 = vpack.c.b16 %v312, %v296
    %v425 = vpack.c.b16 %v313, %v297
    %v426 = vpack.c.b16 %v314, %v298
    %v427 = vpack.c.b16 %v315, %v299
    %v428 = vpack.c.b16 %v316, %v300
    %v429 = vpack.c.b16 %v333, %v317
    %v430 = vpack.c.b16 %v334, %v318
    %v431 = vpack.c.b16 %v335, %v319
    %v432 = vpack.c.b16 %v336, %v320
    %v433 = vpack.c.b16 %v337, %v321
    %v434 = vpack.c.b16 %v338, %v322
    %v435 = vpack.c.b16 %v339, %v323
    %v436 = vpack.c.b16 %v340, %v324
    %v437 = vpack.c.b16 %v341, %v325
    %v438 = vpack.c.b16 %v342, %v326
    %v439 = vpack.c.b16 %v343, %v327
    %v440 = vpack.c.b16 %v344, %v328
    %v441 = vpack.c.b16 %v345, %v329
    %v442 = vpack.c.b16 %v346, %v330
    %v443 = vpack.c.b16 %v347, %v331
    %v444 = vpack.c.b16 %v348, %v332
    %v445 = vpack.c.b16 %v365, %v349
    %v446 = vpack.c.b16 %v366, %v350
    %v447 = vpack.c.b16 %v367, %v351
    %v448 = vpack.c.b16 %v368, %v352
    %v449 = vpack.c.b16 %v369, %v353
    %v450 = vpack.c.b16 %v370, %v354
    %v451 = vpack.c.b16 %v371, %v355
    %v452 = vpack.c.b16 %v372, %v356
    %v453 = vpack.c.b16 %v373, %v357
    %v454 = vpack.c.b16 %v374, %v358
    %v455 = vpack.c.b16 %v375, %v359
    %v456 = vpack.c.b16 %v376, %v360
    %v457 = vpack.c.b16 %v377, %v361
    %v458 = vpack.c.b16 %v378, %v362
    %v459 = vpack.c.b16 %v379, %v363
    %v460 = vpack.c.b16 %v380, %v364
    %v461 = vpack.c.b16 %v397, %v381
    %v462 = vpack.c.b16 %v398, %v382
    %v463 = vpack.c.b16 %v399, %v383
    %v464 = vpack.c.b16 %v400, %v384
    %v465 = vpack.c.b16 %v401, %v385
    %v466 = vpack.c.b16 %v402, %v386
    %v467 = vpack.c.b16 %v403, %v387
    %v468 = vpack.c.b16 %v404, %v388
    %v469 = vpack.c.b16 %v405, %v389
    %v470 = vpack.c.b16 %v406, %v390
    %v471 = vpack.c.b16 %v407, %v391
    %v472 = vpack.c.b16 %v408, %v392
    %v473 = vpack.c.b16 %v409, %v393
    %v474 = vpack.c.b16 %v410, %v394
    %v475 = vpack.c.b16 %v411, %v395
    %v476 = vpack.c.b16 %v412, %v396
    %vm541 = vcmask 523264
    %v543 = vsel %vm541, %v72, 0
    %545 = vmatprep.subr.bf16.mxu0 0
    %546 = vmatpush1.bf16.msra.mxu0 0
    %547 = vmatprep.subr.bf16.mxu0 0
    %548 = vmatpush1.bf16.msra.mxu0 0
    %549 = vmatprep.subr.bf16.mxu0 0
    %550 = vmatpush1.bf16.msra.mxu0 0
    %551 = vmatprep.subr.bf16.mxu0 0
    %552 = vmatpush1.bf16.msra.mxu0 0
    %553 = vmatprep.subr.bf16.mxu0 %v462
    %554 = vmatpush1.bf16.msra.mxu0 %v461
    %555 = vmatprep.subr.bf16.mxu0 %v446
    %556 = vmatpush1.bf16.msra.mxu0 %v445
    %557 = vmatprep.subr.bf16.mxu0 %v430
    %558 = vmatpush1.bf16.msra.mxu0 %v429
    %559 = vmatprep.subr.bf16.mxu0 %v414
    %560 = vmatpush1.bf16.msra.mxu0 %v413
    %561 = vmatprep.subr.bf16.mxu0 0
    %562 = vmatpush2.bf16.msra.mxu0 0
    %563 = vmatprep.subr.bf16.mxu0 0
    %564 = vmatpush2.bf16.msra.mxu0 0
    %565 = vmatprep.subr.bf16.mxu0 0
    %566 = vmatpush2.bf16.msra.mxu0 0
    %567 = vmatprep.subr.bf16.mxu0 0
    %568 = vmatpush2.bf16.msra.mxu0 0
    %569 = vmatprep.subr.bf16.mxu0 0
    %570 = vmatpush2.bf16.msra.mxu0 0
    %571 = vmatprep.subr.bf16.mxu0 0
    %572 = vmatpush2.bf16.msra.mxu0 0
    %573 = vmatprep.subr.bf16.mxu0 0
    %574 = vmatpush2.bf16.msra.mxu0 0
    %575 = vmatprep.subr.bf16.mxu0 0
    %576 = vmatpush2.bf16.msra.mxu0 0
    %577 = vmatprep.mubr.bf16.mxu0 0
    %578 = vmatmul.mubr.bf16.gmra.mxu0 %v543
    %v579 = vpop.f32.mrf.mxu0
    %v580 = vadd.f32 %v144, %v579
    %v581 = vpop.f32.mrf.mxu0
    %v582 = vadd.f32 %v148, %v581
    %v583 = vpop.f32.mrf.mxu0
    %v584 = vpop.f32.mrf.mxu0
    %585 = vdwg.mxu0
    %586 = vmatprep.subr.bf16.mxu0 0
    %587 = vmatpush1.bf16.msra.mxu0 0
    %588 = vmatprep.subr.bf16.mxu0 0
    %589 = vmatpush1.bf16.msra.mxu0 0
    %590 = vmatprep.subr.bf16.mxu0 0
    %591 = vmatpush1.bf16.msra.mxu0 0
    %592 = vmatprep.subr.bf16.mxu0 0
    %593 = vmatpush1.bf16.msra.mxu0 0
    %594 = vmatprep.subr.bf16.mxu0 %v464
    %595 = vmatpush1.bf16.msra.mxu0 %v463
    %596 = vmatprep.subr.bf16.mxu0 %v448
    %597 = vmatpush1.bf16.msra.mxu0 %v447
    %598 = vmatprep.subr.bf16.mxu0 %v432
    %599 = vmatpush1.bf16.msra.mxu0 %v431
    %600 = vmatprep.subr.bf16.mxu0 %v416
    %601 = vmatpush1.bf16.msra.mxu0 %v415
    %602 = vmatprep.subr.bf16.mxu0 0
    %603 = vmatpush2.bf16.msra.mxu0 0
    %604 = vmatprep.subr.bf16.mxu0 0
    %605 = vmatpush2.bf16.msra.mxu0 0
    %606 = vmatprep.subr.bf16.mxu0 0
    %607 = vmatpush2.bf16.msra.mxu0 0
    %608 = vmatprep.subr.bf16.mxu0 0
    %609 = vmatpush2.bf16.msra.mxu0 0
    %610 = vmatprep.subr.bf16.mxu0 0
    %611 = vmatpush2.bf16.msra.mxu0 0
    %612 = vmatprep.subr.bf16.mxu0 0
    %613 = vmatpush2.bf16.msra.mxu0 0
    %614 = vmatprep.subr.bf16.mxu0 0
    %615 = vmatpush2.bf16.msra.mxu0 0
    %616 = vmatprep.subr.bf16.mxu0 0
    %617 = vmatpush2.bf16.msra.mxu0 0
    %618 = vmatprep.mubr.bf16.mxu0 0
    %619 = vmatmul.mubr.bf16.gmra.mxu0 %v543
    %v620 = vpop.f32.mrf.mxu0
    %v621 = vadd.f32 %v152, %v620
    %v622 = vpop.f32.mrf.mxu0
    %v623 = vadd.f32 %v156, %v622
    %v624 = vpop.f32.mrf.mxu0
    %v625 = vpop.f32.mrf.mxu0
    %626 = vdwg.mxu0
    %627 = vmatprep.subr.bf16.mxu0 0
    %628 = vmatpush1.bf16.msra.mxu0 0
    %629 = vmatprep.subr.bf16.mxu0 0
    %630 = vmatpush1.bf16.msra.mxu0 0
    %631 = vmatprep.subr.bf16.mxu0 0
    %632 = vmatpush1.bf16.msra.mxu0 0
    %633 = vmatprep.subr.bf16.mxu0 0
    %634 = vmatpush1.bf16.msra.mxu0 0
    %635 = vmatprep.subr.bf16.mxu0 %v466
    %636 = vmatpush1.bf16.msra.mxu0 %v465
    %637 = vmatprep.subr.bf16.mxu0 %v450
    %638 = vmatpush1.bf16.msra.mxu0 %v449
    %639 = vmatprep.subr.bf16.mxu0 %v434
    %640 = vmatpush1.bf16.msra.mxu0 %v433
    %641 = vmatprep.subr.bf16.mxu0 %v418
    %642 = vmatpush1.bf16.msra.mxu0 %v417
    %643 = vmatprep.subr.bf16.mxu0 0
    %644 = vmatpush2.bf16.msra.mxu0 0
    %645 = vmatprep.subr.bf16.mxu0 0
    %646 = vmatpush2.bf16.msra.mxu0 0
    %647 = vmatprep.subr.bf16.mxu0 0
    %648 = vmatpush2.bf16.msra.mxu0 0
    %649 = vmatprep.subr.bf16.mxu0 0
    %650 = vmatpush2.bf16.msra.mxu0 0
    %651 = vmatprep.subr.bf16.mxu0 0
    %652 = vmatpush2.bf16.msra.mxu0 0
    %653 = vmatprep.subr.bf16.mxu0 0
    %654 = vmatpush2.bf16.msra.mxu0 0
    %655 = vmatprep.subr.bf16.mxu0 0
    %656 = vmatpush2.bf16.msra.mxu0 0
    %657 = vmatprep.subr.bf16.mxu0 0
    %658 = vmatpush2.bf16.msra.mxu0 0
    %659 = vmatprep.mubr.bf16.mxu0 0
    %660 = vmatmul.mubr.bf16.gmra.mxu0 %v543
    %v661 = vpop.f32.mrf.mxu0
    %v662 = vadd.f32 %v160, %v661
    %v663 = vpop.f32.mrf.mxu0
    %v664 = vadd.f32 %v164, %v663
    %v665 = vpop.f32.mrf.mxu0
    %v666 = vpop.f32.mrf.mxu0
    %667 = vdwg.mxu0
    %668 = vmatprep.subr.bf16.mxu0 0
    %669 = vmatpush1.bf16.msra.mxu0 0
    %670 = vmatprep.subr.bf16.mxu0 0
    %671 = vmatpush1.bf16.msra.mxu0 0
    %672 = vmatprep.subr.bf16.mxu0 0
    %673 = vmatpush1.bf16.msra.mxu0 0
    %674 = vmatprep.subr.bf16.mxu0 0
    %675 = vmatpush1.bf16.msra.mxu0 0
    %676 = vmatprep.subr.bf16.mxu0 %v468
    %677 = vmatpush1.bf16.msra.mxu0 %v467
    %678 = vmatprep.subr.bf16.mxu0 %v452
    %679 = vmatpush1.bf16.msra.mxu0 %v451
    %680 = vmatprep.subr.bf16.mxu0 %v436
    %681 = vmatpush1.bf16.msra.mxu0 %v435
    %682 = vmatprep.subr.bf16.mxu0 %v420
    %683 = vmatpush1.bf16.msra.mxu0 %v419
    %684 = vmatprep.subr.bf16.mxu0 0
    %685 = vmatpush2.bf16.msra.mxu0 0
    %686 = vmatprep.subr.bf16.mxu0 0
    %687 = vmatpush2.bf16.msra.mxu0 0
    %688 = vmatprep.subr.bf16.mxu0 0
    %689 = vmatpush2.bf16.msra.mxu0 0
    %690 = vmatprep.subr.bf16.mxu0 0
    %691 = vmatpush2.bf16.msra.mxu0 0
    %692 = vmatprep.subr.bf16.mxu0 0
    %693 = vmatpush2.bf16.msra.mxu0 0
    %694 = vmatprep.subr.bf16.mxu0 0
    %695 = vmatpush2.bf16.msra.mxu0 0
    %696 = vmatprep.subr.bf16.mxu0 0
    %697 = vmatpush2.bf16.msra.mxu0 0
    %698 = vmatprep.subr.bf16.mxu0 0
    %699 = vmatpush2.bf16.msra.mxu0 0
    %700 = vmatprep.mubr.bf16.mxu0 0
    %701 = vmatmul.mubr.bf16.gmra.mxu0 %v543
    %v702 = vpop.f32.mrf.mxu0
    %v703 = vadd.f32 %v168, %v702
    %v704 = vpop.f32.mrf.mxu0
    %v705 = vadd.f32 %v172, %v704
    %v706 = vpop.f32.mrf.mxu0
    %v707 = vpop.f32.mrf.mxu0
    %708 = vdwg.mxu0
    %709 = vmatprep.subr.bf16.mxu0 0
    %710 = vmatpush1.bf16.msra.mxu0 0
    %711 = vmatprep.subr.bf16.mxu0 0
    %712 = vmatpush1.bf16.msra.mxu0 0
    %713 = vmatprep.subr.bf16.mxu0 0
    %714 = vmatpush1.bf16.msra.mxu0 0
    %715 = vmatprep.subr.bf16.mxu0 0
    %716 = vmatpush1.bf16.msra.mxu0 0
    %717 = vmatprep.subr.bf16.mxu0 %v470
    %718 = vmatpush1.bf16.msra.mxu0 %v469
    %719 = vmatprep.subr.bf16.mxu0 %v454
    %720 = vmatpush1.bf16.msra.mxu0 %v453
    %721 = vmatprep.subr.bf16.mxu0 %v438
    %722 = vmatpush1.bf16.msra.mxu0 %v437
    %723 = vmatprep.subr.bf16.mxu0 %v422
    %724 = vmatpush1.bf16.msra.mxu0 %v421
    %725 = vmatprep.subr.bf16.mxu0 0
    %726 = vmatpush2.bf16.msra.mxu0 0
    %727 = vmatprep.subr.bf16.mxu0 0
    %728 = vmatpush2.bf16.msra.mxu0 0
    %729 = vmatprep.subr.bf16.mxu0 0
    %730 = vmatpush2.bf16.msra.mxu0 0
    %731 = vmatprep.subr.bf16.mxu0 0
    %732 = vmatpush2.bf16.msra.mxu0 0
    %733 = vmatprep.subr.bf16.mxu0 0
    %734 = vmatpush2.bf16.msra.mxu0 0
    %735 = vmatprep.subr.bf16.mxu0 0
    %736 = vmatpush2.bf16.msra.mxu0 0
    %737 = vmatprep.subr.bf16.mxu0 0
    %738 = vmatpush2.bf16.msra.mxu0 0
    %739 = vmatprep.subr.bf16.mxu0 0
    %740 = vmatpush2.bf16.msra.mxu0 0
    %741 = vmatprep.mubr.bf16.mxu0 0
    %742 = vmatmul.mubr.bf16.gmra.mxu0 %v543
    %v743 = vpop.f32.mrf.mxu0
    %v744 = vadd.f32 %v176, %v743
    %v745 = vpop.f32.mrf.mxu0
    %v746 = vadd.f32 %v180, %v745
    %v747 = vpop.f32.mrf.mxu0
    %v748 = vpop.f32.mrf.mxu0
    %749 = vdwg.mxu0
    %750 = vmatprep.subr.bf16.mxu0 0
    %751 = vmatpush1.bf16.msra.mxu0 0
    %752 = vmatprep.subr.bf16.mxu0 0
    %753 = vmatpush1.bf16.msra.mxu0 0
    %754 = vmatprep.subr.bf16.mxu0 0
    %755 = vmatpush1.bf16.msra.mxu0 0
    %756 = vmatprep.subr.bf16.mxu0 0
    %757 = vmatpush1.bf16.msra.mxu0 0
    %758 = vmatprep.subr.bf16.mxu0 %v472
    %759 = vmatpush1.bf16.msra.mxu0 %v471
    %760 = vmatprep.subr.bf16.mxu0 %v456
    %761 = vmatpush1.bf16.msra.mxu0 %v455
    %762 = vmatprep.subr.bf16.mxu0 %v440
    %763 = vmatpush1.bf16.msra.mxu0 %v439
    %764 = vmatprep.subr.bf16.mxu0 %v424
    %765 = vmatpush1.bf16.msra.mxu0 %v423
    %766 = vmatprep.subr.bf16.mxu0 0
    %767 = vmatpush2.bf16.msra.mxu0 0
    %768 = vmatprep.subr.bf16.mxu0 0
    %769 = vmatpush2.bf16.msra.mxu0 0
    %770 = vmatprep.subr.bf16.mxu0 0
    %771 = vmatpush2.bf16.msra.mxu0 0
    %772 = vmatprep.subr.bf16.mxu0 0
    %773 = vmatpush2.bf16.msra.mxu0 0
    %774 = vmatprep.subr.bf16.mxu0 0
    %775 = vmatpush2.bf16.msra.mxu0 0
    %776 = vmatprep.subr.bf16.mxu0 0
    %777 = vmatpush2.bf16.msra.mxu0 0
    %778 = vmatprep.subr.bf16.mxu0 0
    %779 = vmatpush2.bf16.msra.mxu0 0
    %780 = vmatprep.subr.bf16.mxu0 0
    %781 = vmatpush2.bf16.msra.mxu0 0
    %782 = vmatprep.mubr.bf16.mxu0 0
    %783 = vmatmul.mubr.bf16.gmra.mxu0 %v543
    %v784 = vpop.f32.mrf.mxu0
    %v785 = vadd.f32 %v184, %v784
    %v786 = vpop.f32.mrf.mxu0
    %v787 = vadd.f32 %v188, %v786
    %v788 = vpop.f32.mrf.mxu0
    %v789 = vpop.f32.mrf.mxu0
    %790 = vdwg.mxu0
    %791 = vmatprep.subr.bf16.mxu0 0
    %792 = vmatpush1.bf16.msra.mxu0 0
    %793 = vmatprep.subr.bf16.mxu0 0
    %794 = vmatpush1.bf16.msra.mxu0 0
    %795 = vmatprep.subr.bf16.mxu0 0
    %796 = vmatpush1.bf16.msra.mxu0 0
    %797 = vmatprep.subr.bf16.mxu0 0
    %798 = vmatpush1.bf16.msra.mxu0 0
    %799 = vmatprep.subr.bf16.mxu0 %v474
    %800 = vmatpush1.bf16.msra.mxu0 %v473
    %801 = vmatprep.subr.bf16.mxu0 %v458
    %802 = vmatpush1.bf16.msra.mxu0 %v457
    %803 = vmatprep.subr.bf16.mxu0 %v442
    %804 = vmatpush1.bf16.msra.mxu0 %v441
    %805 = vmatprep.subr.bf16.mxu0 %v426
    %806 = vmatpush1.bf16.msra.mxu0 %v425
    %807 = vmatprep.subr.bf16.mxu0 0
    %808 = vmatpush2.bf16.msra.mxu0 0
    %809 = vmatprep.subr.bf16.mxu0 0
    %810 = vmatpush2.bf16.msra.mxu0 0
    %811 = vmatprep.subr.bf16.mxu0 0
    %812 = vmatpush2.bf16.msra.mxu0 0
    %813 = vmatprep.subr.bf16.mxu0 0
    %814 = vmatpush2.bf16.msra.mxu0 0
    %815 = vmatprep.subr.bf16.mxu0 0
    %816 = vmatpush2.bf16.msra.mxu0 0
    %817 = vmatprep.subr.bf16.mxu0 0
    %818 = vmatpush2.bf16.msra.mxu0 0
    %819 = vmatprep.subr.bf16.mxu0 0
    %820 = vmatpush2.bf16.msra.mxu0 0
    %821 = vmatprep.subr.bf16.mxu0 0
    %822 = vmatpush2.bf16.msra.mxu0 0
    %823 = vmatprep.mubr.bf16.mxu0 0
    %824 = vmatmul.mubr.bf16.gmra.mxu0 %v543
    %v825 = vpop.f32.mrf.mxu0
    %v826 = vadd.f32 %v192, %v825
    %v827 = vpop.f32.mrf.mxu0
    %v828 = vadd.f32 %v196, %v827
    %v829 = vpop.f32.mrf.mxu0
    %v830 = vpop.f32.mrf.mxu0
    %831 = vdwg.mxu0
    %832 = vmatprep.subr.bf16.mxu0 0
    %833 = vmatpush1.bf16.msra.mxu0 0
    %834 = vmatprep.subr.bf16.mxu0 0
    %835 = vmatpush1.bf16.msra.mxu0 0
    %836 = vmatprep.subr.bf16.mxu0 0
    %837 = vmatpush1.bf16.msra.mxu0 0
    %838 = vmatprep.subr.bf16.mxu0 0
    %839 = vmatpush1.bf16.msra.mxu0 0
    %840 = vmatprep.subr.bf16.mxu0 %v476
    %841 = vmatpush1.bf16.msra.mxu0 %v475
    %842 = vmatprep.subr.bf16.mxu0 %v460
    %843 = vmatpush1.bf16.msra.mxu0 %v459
    %844 = vmatprep.subr.bf16.mxu0 %v444
    %845 = vmatpush1.bf16.msra.mxu0 %v443
    %846 = vmatprep.subr.bf16.mxu0 %v428
    %847 = vmatpush1.bf16.msra.mxu0 %v427
    %848 = vmatprep.subr.bf16.mxu0 0
    %849 = vmatpush2.bf16.msra.mxu0 0
    %850 = vmatprep.subr.bf16.mxu0 0
    %851 = vmatpush2.bf16.msra.mxu0 0
    %852 = vmatprep.subr.bf16.mxu0 0
    %853 = vmatpush2.bf16.msra.mxu0 0
    %854 = vmatprep.subr.bf16.mxu0 0
    %855 = vmatpush2.bf16.msra.mxu0 0
    %856 = vmatprep.subr.bf16.mxu0 0
    %857 = vmatpush2.bf16.msra.mxu0 0
    %858 = vmatprep.subr.bf16.mxu0 0
    %859 = vmatpush2.bf16.msra.mxu0 0
    %860 = vmatprep.subr.bf16.mxu0 0
    %861 = vmatpush2.bf16.msra.mxu0 0
    %862 = vmatprep.subr.bf16.mxu0 0
    %863 = vmatpush2.bf16.msra.mxu0 0
    %864 = vmatprep.mubr.bf16.mxu0 0
    %865 = vmatmul.mubr.bf16.gmra.mxu0 %v543
    %v866 = vpop.f32.mrf.mxu0
    %v867 = vadd.f32 %v200, %v866
    %v868 = vpop.f32.mrf.mxu0
    %v869 = vadd.f32 %v204, %v868
    %v870 = vpop.f32.mrf.mxu0
    %v871 = vpop.f32.mrf.mxu0
    %872 = vdwg.mxu0
    %v873 = vmax.f32 %v580, 0.0
    %v874 = vmax.f32 %v582, 0.0
    %v875 = vmax.f32 %v621, 0.0
    %v876 = vmax.f32 %v623, 0.0
    %v877 = vmax.f32 %v662, 0.0
    %v878 = vmax.f32 %v664, 0.0
    %v879 = vmax.f32 %v703, 0.0
    %v880 = vmax.f32 %v705, 0.0
    %v881 = vmax.f32 %v744, 0.0
    %v882 = vmax.f32 %v746, 0.0
    %v883 = vmax.f32 %v785, 0.0
    %v884 = vmax.f32 %v787, 0.0
    %v885 = vmax.f32 %v826, 0.0
    %v886 = vmax.f32 %v828, 0.0
    %v887 = vmax.f32 %v867, 0.0
    %v888 = vmax.f32 %v869, 0.0
    %v889 = vld [vmem:[#allocation8] sm:$0xff]
    %v890 = vld [vmem:[#allocation8 + $0x8] sm:$0xff]
    %v893 = vlaneseq
    %v894 = vshrl.u32 %v893, 7
    %v895 = vsub.s32 0, %v894
    %v896 = vrot.slane %v889, %v895
    %v897 = vlaneseq
    %v898 = vshrl.u32 %v897, 7
    %v899 = vsub.s32 1, %v898
    %v900 = vrot.slane %v889, %v899
    %v901 = vlaneseq
    %v902 = vshrl.u32 %v901, 7
    %v903 = vsub.s32 2, %v902
    %v904 = vrot.slane %v889, %v903
    %v905 = vlaneseq
    %v906 = vshrl.u32 %v905, 7
    %v907 = vsub.s32 3, %v906
    %v908 = vrot.slane %v889, %v907
    %v909 = vlaneseq
    %v910 = vshrl.u32 %v909, 7
    %v911 = vsub.s32 4, %v910
    %v912 = vrot.slane %v889, %v911
    %v913 = vlaneseq
    %v914 = vshrl.u32 %v913, 7
    %v915 = vsub.s32 5, %v914
    %v916 = vrot.slane %v889, %v915
    %v917 = vlaneseq
    %v918 = vshrl.u32 %v917, 7
    %v919 = vsub.s32 6, %v918
    %v920 = vrot.slane %v889, %v919
    %v921 = vlaneseq
    %v922 = vshrl.u32 %v921, 7
    %v923 = vsub.s32 7, %v922
    %v924 = vrot.slane %v889, %v923
    %v925 = vlaneseq
    %v926 = vshrl.u32 %v925, 7
    %v927 = vsub.s32 0, %v926
    %v928 = vrot.slane %v890, %v927
    %v929 = vlaneseq
    %v930 = vshrl.u32 %v929, 7
    %v931 = vsub.s32 1, %v930
    %v932 = vrot.slane %v890, %v931
    %v933 = vlaneseq
    %v934 = vshrl.u32 %v933, 7
    %v935 = vsub.s32 2, %v934
    %v936 = vrot.slane %v890, %v935
    %v937 = vlaneseq
    %v938 = vshrl.u32 %v937, 7
    %v939 = vsub.s32 3, %v938
    %v940 = vrot.slane %v890, %v939
    %v941 = vlaneseq
    %v942 = vshrl.u32 %v941, 7
    %v943 = vsub.s32 4, %v942
    %v944 = vrot.slane %v890, %v943
    %v945 = vlaneseq
    %v946 = vshrl.u32 %v945, 7
    %v947 = vsub.s32 5, %v946
    %v948 = vrot.slane %v890, %v947
    %v949 = vlaneseq
    %v950 = vshrl.u32 %v949, 7
    %v951 = vsub.s32 6, %v950
    %v952 = vrot.slane %v890, %v951
    %v953 = vlaneseq
    %v954 = vshrl.u32 %v953, 7
    %v955 = vsub.s32 7, %v954
    %v956 = vrot.slane %v890, %v955
    %v973 = vmul.f32 %v873, %v896
    %v974 = vmul.f32 %v874, %v900
    %v975 = vmul.f32 %v875, %v904
    %v976 = vmul.f32 %v876, %v908
    %v977 = vmul.f32 %v877, %v912
    %v978 = vmul.f32 %v878, %v916
    %v979 = vmul.f32 %v879, %v920
    %v980 = vmul.f32 %v880, %v924
    %v981 = vmul.f32 %v881, %v928
    %v982 = vmul.f32 %v882, %v932
    %v983 = vmul.f32 %v883, %v936
    %v984 = vmul.f32 %v884, %v940
    %v985 = vmul.f32 %v885, %v944
    %v986 = vmul.f32 %v886, %v948
    %v987 = vmul.f32 %v887, %v952
    %v988 = vmul.f32 %v888, %v956
    %v989 = vadd.f32 %v973, %v974
    %v990 = vadd.f32 %v989, %v975
    %v991 = vadd.f32 %v990, %v976
    %v992 = vadd.f32 %v991, %v977
    %v993 = vadd.f32 %v992, %v978
    %v994 = vadd.f32 %v993, %v979
    %v995 = vadd.f32 %v994, %v980
    %v996 = vadd.f32 %v995, %v981
    %v997 = vadd.f32 %v996, %v982
    %v998 = vadd.f32 %v997, %v983
    %v999 = vadd.f32 %v998, %v984
    %v1000 = vadd.f32 %v999, %v985
    %v1001 = vadd.f32 %v1000, %v986
    %v1002 = vadd.f32 %v1001, %v987
    %v1003 = vadd.f32 %v1002, %v988
    %1004 = vadd.xlane.f32.xlu0 %v1003
    %v1005 = vpop.xlane.xlu0 %1004
    %s1006 = sld [smem:[#allocation2]]
    %v1007 = vstv %s1006
    %v1008 = vadd.f32 %v1005, %v1007
    %vm1009 = vcmask 7168
    %1010 = vst.msk [vmem:[%s5] sm:$0xff] %vm1009, %v1008
    // Predicated region
    $region38: #{tpu_custom_call.1} parent=1 // pred_check
      _
    $region39: #{tpu_custom_call.1} parent=1 // pred_check_branch
      %1012 = sbr.rel (0) target = $region41
    $region40: #{tpu_custom_call.1} parent=1 // pred_region
      _
    $region41: #{tpu_custom_call.1} parent=1 // pred_fallthru
      _
    // Predicated region
    $region42: #{tpu_custom_call.1} parent=1 // pred_check
      _
    $region43: #{tpu_custom_call.1} parent=1 // pred_check_branch
      %1014 = sbr.rel (0) target = $region45
    $region44: #{tpu_custom_call.1} parent=1 // pred_region
      _
    $region45: #{tpu_custom_call.1} parent=1 // pred_fallthru
      _
    %1015 = vsyncpa [#allocation4], 1
    %1016 = vsyncpa [#allocation6], 1
    %1017 = vsyncpa [#allocation9], 1

</llo_original>
